<compile_context>
chip_gen: v7x
topology: tpu7x:2x2x1
jax: 0.10.0
libtpu: 0.0.40
codegen_flags: <defaults>
</compile_context>

<pallas_src>
import functools

import jax
import jax.numpy as jnp
from jax.experimental import pallas as pl
from jax.experimental.pallas import tpu as pltpu


def _dwsep_kernel(x_ref, wdw_ref, wpw_ref, beff_ref, o_ref, *,
                  kh_size, kw_size, w_pad, cin, cout, lw):
    # x_ref:    (1, Cin, Lp)   zero-padded input, spatial flattened onto the lane axis
    # wdw_ref:  (Cin, KH*KW)   depthwise weights
    # wpw_ref:  (Cout, Cin)    pointwise weights
    # beff_ref: (Cout, 1)      fused bias = b_pw + w_pw @ b_dw
    # o_ref:    (1, Cout, Lw)  "wide" output, Lw = Ho * Wpad (columns >= Wo are garbage)
    x = x_ref[0].astype(jnp.float32)           # (Cin, Lp)
    wdw = wdw_ref[...].astype(jnp.float32)     # (Cin, KH*KW)
    wpw = wpw_ref[...].astype(jnp.float32)     # (Cout, Cin)
    beff = beff_ref[...].astype(jnp.float32)   # (Cout, 1)

    # Depthwise conv (stride 1): each tap is a static lane-shifted slice of the
    # flattened padded image times a per-channel scalar -> fully lane-dense VPU FMA.
    acc = jnp.zeros((cin, lw), jnp.float32)
    for kh in range(kh_size):
        for kw in range(kw_size):
            off = kh * w_pad + kw
            tap = kh * kw_size + kw
            acc = acc + x[:, off:off + lw] * wdw[:, tap][:, None]

    # Pointwise 1x1 conv: Cin outer-product FMAs on the VPU (MXU skipped on purpose
    # at Cin=4 / Cout=8).  Bias (already fused with the depthwise bias) seeds the sum.
    out = jnp.broadcast_to(beff, (cout, lw))
    for ci in range(cin):
        out = out + wpw[:, ci][:, None] * acc[ci][None, :]

    o_ref[0] = out.astype(o_ref.dtype)


def depthwise_separable_conv(x_nchw, w_dw, b_dw, w_pw, b_pw, *, stride=1, padding=0):
    """x_nchw: (N, Cin, H, W); w_dw: (Cin, 1, KH, KW); b_dw: (Cin,);
       w_pw: (Cout, Cin, 1, 1); b_pw: (Cout,).  Returns (N, Cout, Ho, Wo)."""
    assert stride == 1  # TODO(synk): strided depthwise slicing not implemented in-kernel.
    n, cin, h, w = x_nchw.shape
    kh_size, kw_size = w_dw.shape[2], w_dw.shape[3]
    cout = w_pw.shape[0]
    out_h = h + 2 * padding - kh_size + 1
    out_w = w + 2 * padding - kw_size + 1
    h_pad = h + 2 * padding
    w_pad = w + 2 * padding
    lw = out_h * w_pad                               # wide output length (lane axis)
    flat_need = h_pad * w_pad + (kw_size - 1)        # last tap's slice end
    lp = 128 * pl.cdiv(flat_need, 128)               # lane-aligned padded input length

    # Glue (no transposes): spatial zero-pad, flatten H*W onto the lane axis,
    # pad the flat axis up to a multiple of 128.
    x_sp = jnp.pad(x_nchw, ((0, 0), (0, 0), (padding, padding), (padding, padding)))
    x_flat = jnp.pad(x_sp.reshape(n, cin, h_pad * w_pad),
                     ((0, 0), (0, 0), (0, lp - h_pad * w_pad)))

    wdw_k = w_dw[:, 0, :, :].reshape(cin, kh_size * kw_size)    # (Cin, K*K)
    wpw_k = w_pw[:, :, 0, 0]                                    # (Cout, Cin)
    # Fold depthwise bias into the pointwise bias: pw(dw(x)+b_dw)+b_pw = pw(dw(x)) + (W_pw b_dw + b_pw)
    beff_k = (b_pw + wpw_k @ b_dw).reshape(cout, 1)

    kernel = functools.partial(_dwsep_kernel, kh_size=kh_size, kw_size=kw_size,
                               w_pad=w_pad, cin=cin, cout=cout, lw=lw)

    out_wide = pl.pallas_call(
        kernel,
        out_shape=jax.ShapeDtypeStruct((n, cout, lw), x_nchw.dtype),
        grid_spec=pltpu.PrefetchScalarGridSpec(
            num_scalar_prefetch=0,
            grid=(n,),
            in_specs=[
                pl.BlockSpec((1, cin, lp), lambda b: (b, 0, 0)),
                pl.BlockSpec((cin, kh_size * kw_size), lambda b: (0, 0)),
                pl.BlockSpec((cout, cin), lambda b: (0, 0)),
                pl.BlockSpec((cout, 1), lambda b: (0, 0)),
            ],
            out_specs=pl.BlockSpec((1, cout, lw), lambda b: (b, 0, 0)),
        ),
        compiler_params=pltpu.CompilerParams(dimension_semantics=("parallel",)),
    )(x_flat, wdw_k, wpw_k, beff_k)

    # Drop the Wpad - Wo garbage columns and reshape; still no transposes.
    return out_wide.reshape(n, cout, out_h, w_pad)[:, :, :, :out_w]


def _reference(x, w_dw, b_dw, w_pw, b_pw, *, stride, padding, cin):
    y = jax.lax.conv_general_dilated(
        x, w_dw, window_strides=(stride, stride),
        padding=[(padding, padding), (padding, padding)],
        feature_group_count=cin,
        dimension_numbers=("NCHW", "OIHW", "NCHW"))
    y = y + b_dw[None, :, None, None]
    z = jax.lax.conv_general_dilated(
        y, w_pw, window_strides=(1, 1), padding="VALID",
        dimension_numbers=("NCHW", "OIHW", "NCHW"))
    z = z + b_pw[None, :, None, None]
    return z


if __name__ == "__main__":
    # Module config: in_channels=4, out_channels=8, kernel_size=3, stride=1, padding=1
    N, Cin, H, W = 2, 4, 16, 16
    Cout, K, STRIDE, PAD = 8, 3, 1, 1

    key = jax.random.PRNGKey(0)
    k0, k1, k2, k3, k4 = jax.random.split(key, 5)
    x = jax.random.normal(k0, (N, Cin, H, W), dtype=jnp.float32)

    # Deterministic parameter init (shapes match nn.Conv2d defaults).
    fan_dw = 1 * K * K
    w_dw = jax.random.uniform(k1, (Cin, 1, K, K), jnp.float32,
                              -1.0 / fan_dw ** 0.5, 1.0 / fan_dw ** 0.5)
    b_dw = jax.random.uniform(k2, (Cin,), jnp.float32,
                              -1.0 / fan_dw ** 0.5, 1.0 / fan_dw ** 0.5)
    fan_pw = Cin * 1 * 1
    w_pw = jax.random.uniform(k3, (Cout, Cin, 1, 1), jnp.float32,
                              -1.0 / fan_pw ** 0.5, 1.0 / fan_pw ** 0.5)
    b_pw = jax.random.uniform(k4, (Cout,), jnp.float32,
                              -1.0 / fan_pw ** 0.5, 1.0 / fan_pw ** 0.5)

    out = depthwise_separable_conv(x, w_dw, b_dw, w_pw, b_pw,
                                   stride=STRIDE, padding=PAD)
    out = jax.block_until_ready(out)

    ref = _reference(x, w_dw, b_dw, w_pw, b_pw, stride=STRIDE, padding=PAD, cin=Cin)
    assert out.shape == ref.shape == (N, Cout, H, W)
    assert jnp.allclose(out, ref, atol=1e-4, rtol=1e-4)
    print("KERNEL_OK")
</pallas_src>

<mosaic_0001>
module attributes {stable_mosaic.version = 11 : i64} {
  func.func @_dwsep_kernel(%arg0: i32, %arg1: memref<1x4x384xf32, #tpu.memory_space<vmem>>, %arg2: memref<4x9xf32, #tpu.memory_space<vmem>>, %arg3: memref<8x4xf32, #tpu.memory_space<vmem>>, %arg4: memref<8x1xf32, #tpu.memory_space<vmem>>, %arg5: memref<1x8x288xf32, #tpu.memory_space<vmem>>) attributes {dimension_semantics = [#tpu.dimension_semantics<parallel>], iteration_bounds = array<i64: 2>, scalar_prefetch = 0 : i64, scratch_operands = 0 : i64, tpu.core_type = #tpu.core_type<tc>, window_params = [{transform_indices = @transform_0, window_bounds = array<i64: 1, 4, 384>}, {pipeline_mode = #tpu.pipeline_mode<synchronous>, transform_indices = @transform_1, window_bounds = array<i64: 4, 9>}, {pipeline_mode = #tpu.pipeline_mode<synchronous>, transform_indices = @transform_2, window_bounds = array<i64: 8, 4>}, {pipeline_mode = #tpu.pipeline_mode<synchronous>, transform_indices = @transform_3, window_bounds = array<i64: 8, 1>}, {transform_indices = @transform_4, window_bounds = array<i64: 1, 8, 288>}]} {
    %c0 = arith.constant 0 : index
    %c0_0 = arith.constant 0 : index
    %c0_1 = arith.constant 0 : index
    %0 = vector.load %arg1[%c0, %c0_0, %c0_1] : memref<1x4x384xf32, #tpu.memory_space<vmem>>, vector<1x4x384xf32>
    %1 = vector.shape_cast %0 : vector<1x4x384xf32> to vector<4x384xf32>
    %c0_2 = arith.constant 0 : index
    %c0_3 = arith.constant 0 : index
    %2 = vector.load %arg2[%c0_2, %c0_3] : memref<4x9xf32, #tpu.memory_space<vmem>>, vector<4x9xf32>
    %c0_4 = arith.constant 0 : index
    %c0_5 = arith.constant 0 : index
    %3 = vector.load %arg3[%c0_4, %c0_5] : memref<8x4xf32, #tpu.memory_space<vmem>>, vector<8x4xf32>
    %c0_6 = arith.constant 0 : index
    %c0_7 = arith.constant 0 : index
    %4 = vector.load %arg4[%c0_6, %c0_7] : memref<8x1xf32, #tpu.memory_space<vmem>>, vector<8x1xf32>
    %cst = arith.constant 0.000000e+00 : f32
    %5 = vector.broadcast %cst : f32 to vector<4x288xf32>
    %6 = vector.extract_strided_slice %1 {offsets = [0, 0], sizes = [4, 288], strides = [1, 1]} : vector<4x384xf32> to vector<4x288xf32>
    %7 = vector.extract_strided_slice %2 {offsets = [0, 0], sizes = [4, 1], strides = [1, 1]} : vector<4x9xf32> to vector<4x1xf32>
    %8 = vector.shape_cast %7 : vector<4x1xf32> to vector<4xf32>
    %9 = vector.shape_cast %8 : vector<4xf32> to vector<4x1xf32>
    %10 = vector.broadcast %9 : vector<4x1xf32> to vector<4x288xf32>
    %11 = arith.mulf %6, %10 : vector<4x288xf32>
    %12 = arith.addf %5, %11 : vector<4x288xf32>
    %13 = vector.extract_strided_slice %1 {offsets = [0, 1], sizes = [4, 288], strides = [1, 1]} : vector<4x384xf32> to vector<4x288xf32>
    %14 = vector.extract_strided_slice %2 {offsets = [0, 1], sizes = [4, 1], strides = [1, 1]} : vector<4x9xf32> to vector<4x1xf32>
    %15 = vector.shape_cast %14 : vector<4x1xf32> to vector<4xf32>
    %16 = vector.shape_cast %15 : vector<4xf32> to vector<4x1xf32>
    %17 = vector.broadcast %16 : vector<4x1xf32> to vector<4x288xf32>
    %18 = arith.mulf %13, %17 : vector<4x288xf32>
    %19 = arith.addf %12, %18 : vector<4x288xf32>
    %20 = vector.extract_strided_slice %1 {offsets = [0, 2], sizes = [4, 288], strides = [1, 1]} : vector<4x384xf32> to vector<4x288xf32>
    %21 = vector.extract_strided_slice %2 {offsets = [0, 2], sizes = [4, 1], strides = [1, 1]} : vector<4x9xf32> to vector<4x1xf32>
    %22 = vector.shape_cast %21 : vector<4x1xf32> to vector<4xf32>
    %23 = vector.shape_cast %22 : vector<4xf32> to vector<4x1xf32>
    %24 = vector.broadcast %23 : vector<4x1xf32> to vector<4x288xf32>
    %25 = arith.mulf %20, %24 : vector<4x288xf32>
    %26 = arith.addf %19, %25 : vector<4x288xf32>
    %27 = vector.extract_strided_slice %1 {offsets = [0, 18], sizes = [4, 288], strides = [1, 1]} : vector<4x384xf32> to vector<4x288xf32>
    %28 = vector.extract_strided_slice %2 {offsets = [0, 3], sizes = [4, 1], strides = [1, 1]} : vector<4x9xf32> to vector<4x1xf32>
    %29 = vector.shape_cast %28 : vector<4x1xf32> to vector<4xf32>
    %30 = vector.shape_cast %29 : vector<4xf32> to vector<4x1xf32>
    %31 = vector.broadcast %30 : vector<4x1xf32> to vector<4x288xf32>
    %32 = arith.mulf %27, %31 : vector<4x288xf32>
    %33 = arith.addf %26, %32 : vector<4x288xf32>
    %34 = vector.extract_strided_slice %1 {offsets = [0, 19], sizes = [4, 288], strides = [1, 1]} : vector<4x384xf32> to vector<4x288xf32>
    %35 = vector.extract_strided_slice %2 {offsets = [0, 4], sizes = [4, 1], strides = [1, 1]} : vector<4x9xf32> to vector<4x1xf32>
    %36 = vector.shape_cast %35 : vector<4x1xf32> to vector<4xf32>
    %37 = vector.shape_cast %36 : vector<4xf32> to vector<4x1xf32>
    %38 = vector.broadcast %37 : vector<4x1xf32> to vector<4x288xf32>
    %39 = arith.mulf %34, %38 : vector<4x288xf32>
    %40 = arith.addf %33, %39 : vector<4x288xf32>
    %41 = vector.extract_strided_slice %1 {offsets = [0, 20], sizes = [4, 288], strides = [1, 1]} : vector<4x384xf32> to vector<4x288xf32>
    %42 = vector.extract_strided_slice %2 {offsets = [0, 5], sizes = [4, 1], strides = [1, 1]} : vector<4x9xf32> to vector<4x1xf32>
    %43 = vector.shape_cast %42 : vector<4x1xf32> to vector<4xf32>
    %44 = vector.shape_cast %43 : vector<4xf32> to vector<4x1xf32>
    %45 = vector.broadcast %44 : vector<4x1xf32> to vector<4x288xf32>
    %46 = arith.mulf %41, %45 : vector<4x288xf32>
    %47 = arith.addf %40, %46 : vector<4x288xf32>
    %48 = vector.extract_strided_slice %1 {offsets = [0, 36], sizes = [4, 288], strides = [1, 1]} : vector<4x384xf32> to vector<4x288xf32>
    %49 = vector.extract_strided_slice %2 {offsets = [0, 6], sizes = [4, 1], strides = [1, 1]} : vector<4x9xf32> to vector<4x1xf32>
    %50 = vector.shape_cast %49 : vector<4x1xf32> to vector<4xf32>
    %51 = vector.shape_cast %50 : vector<4xf32> to vector<4x1xf32>
    %52 = vector.broadcast %51 : vector<4x1xf32> to vector<4x288xf32>
    %53 = arith.mulf %48, %52 : vector<4x288xf32>
    %54 = arith.addf %47, %53 : vector<4x288xf32>
    %55 = vector.extract_strided_slice %1 {offsets = [0, 37], sizes = [4, 288], strides = [1, 1]} : vector<4x384xf32> to vector<4x288xf32>
    %56 = vector.extract_strided_slice %2 {offsets = [0, 7], sizes = [4, 1], strides = [1, 1]} : vector<4x9xf32> to vector<4x1xf32>
    %57 = vector.shape_cast %56 : vector<4x1xf32> to vector<4xf32>
    %58 = vector.shape_cast %57 : vector<4xf32> to vector<4x1xf32>
    %59 = vector.broadcast %58 : vector<4x1xf32> to vector<4x288xf32>
    %60 = arith.mulf %55, %59 : vector<4x288xf32>
    %61 = arith.addf %54, %60 : vector<4x288xf32>
    %62 = vector.extract_strided_slice %1 {offsets = [0, 38], sizes = [4, 288], strides = [1, 1]} : vector<4x384xf32> to vector<4x288xf32>
    %63 = vector.extract_strided_slice %2 {offsets = [0, 8], sizes = [4, 1], strides = [1, 1]} : vector<4x9xf32> to vector<4x1xf32>
    %64 = vector.shape_cast %63 : vector<4x1xf32> to vector<4xf32>
    %65 = vector.shape_cast %64 : vector<4xf32> to vector<4x1xf32>
    %66 = vector.broadcast %65 : vector<4x1xf32> to vector<4x288xf32>
    %67 = arith.mulf %62, %66 : vector<4x288xf32>
    %68 = arith.addf %61, %67 : vector<4x288xf32>
    %69 = vector.shape_cast %4 : vector<8x1xf32> to vector<8x1xf32>
    %70 = vector.broadcast %69 : vector<8x1xf32> to vector<8x288xf32>
    %71 = vector.extract_strided_slice %3 {offsets = [0, 0], sizes = [8, 1], strides = [1, 1]} : vector<8x4xf32> to vector<8x1xf32>
    %72 = vector.shape_cast %71 : vector<8x1xf32> to vector<8xf32>
    %73 = vector.shape_cast %72 : vector<8xf32> to vector<8x1xf32>
    %74 = vector.extract_strided_slice %68 {offsets = [0, 0], sizes = [1, 288], strides = [1, 1]} : vector<4x288xf32> to vector<1x288xf32>
    %75 = vector.shape_cast %74 : vector<1x288xf32> to vector<288xf32>
    %76 = vector.shape_cast %75 : vector<288xf32> to vector<1x288xf32>
    %77 = vector.broadcast %73 : vector<8x1xf32> to vector<8x288xf32>
    %78 = vector.broadcast %76 : vector<1x288xf32> to vector<8x288xf32>
    %79 = arith.mulf %77, %78 : vector<8x288xf32>
    %80 = arith.addf %70, %79 : vector<8x288xf32>
    %81 = vector.extract_strided_slice %3 {offsets = [0, 1], sizes = [8, 1], strides = [1, 1]} : vector<8x4xf32> to vector<8x1xf32>
    %82 = vector.shape_cast %81 : vector<8x1xf32> to vector<8xf32>
    %83 = vector.shape_cast %82 : vector<8xf32> to vector<8x1xf32>
    %84 = vector.extract_strided_slice %68 {offsets = [1, 0], sizes = [1, 288], strides = [1, 1]} : vector<4x288xf32> to vector<1x288xf32>
    %85 = vector.shape_cast %84 : vector<1x288xf32> to vector<288xf32>
    %86 = vector.shape_cast %85 : vector<288xf32> to vector<1x288xf32>
    %87 = vector.broadcast %83 : vector<8x1xf32> to vector<8x288xf32>
    %88 = vector.broadcast %86 : vector<1x288xf32> to vector<8x288xf32>
    %89 = arith.mulf %87, %88 : vector<8x288xf32>
    %90 = arith.addf %80, %89 : vector<8x288xf32>
    %91 = vector.extract_strided_slice %3 {offsets = [0, 2], sizes = [8, 1], strides = [1, 1]} : vector<8x4xf32> to vector<8x1xf32>
    %92 = vector.shape_cast %91 : vector<8x1xf32> to vector<8xf32>
    %93 = vector.shape_cast %92 : vector<8xf32> to vector<8x1xf32>
    %94 = vector.extract_strided_slice %68 {offsets = [2, 0], sizes = [1, 288], strides = [1, 1]} : vector<4x288xf32> to vector<1x288xf32>
    %95 = vector.shape_cast %94 : vector<1x288xf32> to vector<288xf32>
    %96 = vector.shape_cast %95 : vector<288xf32> to vector<1x288xf32>
    %97 = vector.broadcast %93 : vector<8x1xf32> to vector<8x288xf32>
    %98 = vector.broadcast %96 : vector<1x288xf32> to vector<8x288xf32>
    %99 = arith.mulf %97, %98 : vector<8x288xf32>
    %100 = arith.addf %90, %99 : vector<8x288xf32>
    %101 = vector.extract_strided_slice %3 {offsets = [0, 3], sizes = [8, 1], strides = [1, 1]} : vector<8x4xf32> to vector<8x1xf32>
    %102 = vector.shape_cast %101 : vector<8x1xf32> to vector<8xf32>
    %103 = vector.shape_cast %102 : vector<8xf32> to vector<8x1xf32>
    %104 = vector.extract_strided_slice %68 {offsets = [3, 0], sizes = [1, 288], strides = [1, 1]} : vector<4x288xf32> to vector<1x288xf32>
    %105 = vector.shape_cast %104 : vector<1x288xf32> to vector<288xf32>
    %106 = vector.shape_cast %105 : vector<288xf32> to vector<1x288xf32>
    %107 = vector.broadcast %103 : vector<8x1xf32> to vector<8x288xf32>
    %108 = vector.broadcast %106 : vector<1x288xf32> to vector<8x288xf32>
    %109 = arith.mulf %107, %108 : vector<8x288xf32>
    %110 = arith.addf %100, %109 : vector<8x288xf32>
    %c0_8 = arith.constant 0 : index
    %c0_9 = arith.constant 0 : index
    %c0_10 = arith.constant 0 : index
    %111 = vector.load %arg5[%c0_8, %c0_9, %c0_10] : memref<1x8x288xf32, #tpu.memory_space<vmem>>, vector<1x8x288xf32>
    %112 = vector.shape_cast %111 : vector<1x8x288xf32> to vector<8x288xf32>
    %113 = vector.shape_cast %110 : vector<8x288xf32> to vector<1x8x288xf32>
    tpu.vector_store %arg5[%c0_8, %c0_9, %c0_10], %113 {strides = array<i32>} : memref<1x8x288xf32, #tpu.memory_space<vmem>>, vector<1x8x288xf32>,
    return
  }
  func.func @transform_0(%arg0: i32) -> (i32, i32, i32) {
    %c0_i32 = arith.constant 0 : i32
    %c0_i32_0 = arith.constant 0 : i32
    %c0_i32_1 = arith.constant 0 : i32
    return %arg0, %c0_i32, %c0_i32_0 : i32, i32, i32
  }
  func.func @transform_1(%arg0: i32) -> (i32, i32) {
    %c0_i32 = arith.constant 0 : i32
    %c0_i32_0 = arith.constant 0 : i32
    %c0_i32_1 = arith.constant 0 : i32
    return %c0_i32, %c0_i32_0 : i32, i32
  }
  func.func @transform_2(%arg0: i32) -> (i32, i32) {
    %c0_i32 = arith.constant 0 : i32
    %c0_i32_0 = arith.constant 0 : i32
    %c0_i32_1 = arith.constant 0 : i32
    return %c0_i32, %c0_i32_0 : i32, i32
  }
  func.func @transform_3(%arg0: i32) -> (i32, i32) {
    %c0_i32 = arith.constant 0 : i32
    %c0_i32_0 = arith.constant 0 : i32
    %c0_i32_1 = arith.constant 0 : i32
    return %c0_i32, %c0_i32_0 : i32, i32
  }
  func.func @transform_4(%arg0: i32) -> (i32, i32, i32) {
    %c0_i32 = arith.constant 0 : i32
    %c0_i32_0 = arith.constant 0 : i32
    %c0_i32_1 = arith.constant 0 : i32
    return %arg0, %c0_i32, %c0_i32_0 : i32, i32, i32
  }
}

</mosaic_0001>

<llo_original>
// kernel: tpu_custom_call.1
$region0: #{tpu_custom_call.1}
  #allocation0 [shape = 'u32[]', space=smem, size = 0x4, offset = 0x4, fixed_abs, tag = 'smem constant byte address 0x4 - core index']
  #allocation1 [shape = 'u32[144,128]{1,0:T(1,128)}', space=vmem, size = 0x12000, scoped, tag = 'internal scratch']
  %s0 = inlined_call_operand.hbm [shape: f32[2,4,384], index: 0, kind: input, shape index: {}]
  %s1 = inlined_call_operand.vmem [shape: f32[4,9], index: 1, kind: input, shape index: {}]
  %s2 = inlined_call_operand.vmem [shape: f32[8,4], index: 2, kind: input, shape index: {}]
  %s3 = inlined_call_operand.vmem [shape: f32[8,1], index: 3, kind: input, shape index: {}]
  %s4 = inlined_call_operand.hbm [shape: f32[2,8,288], index: 4, kind: output, shape index: {}]
  %s5 = sld [smem:[#allocation0]]
  $region53: #{tpu_custom_call.1} parent=0
    _
  %s7 = ssub.s32 1, %s5
  %s8 = scalar_select 0, %s7, %s5
  $region1: #{tpu_custom_call.1} parent=0
    #allocation2 [shape = 'u8[12288]{0}', space=vmem, size = 0x3000, scoped, tag = 'input window, operand 0']
    #allocation3 [shape = 's32[2]{0}', space=sflag, size = 0x8, scoped, tag = 'scoped memory for tpu_custom_call.1']
    #allocation4 [shape = 's32[2]{0}', space=sflag, size = 0x8, scoped, tag = 'scoped memory for tpu_custom_call.1']
    #allocation5 [shape = 'u8[24576]{0}', space=vmem, size = 0x6000, scoped, tag = 'output window, operand 0']
    %9 = vsyncpa [#allocation3], 0
    %s10 = scalar_lea.sflag [#allocation3], 1
    %11 = vsyncpa %s10, 0
    %12 = vsyncpa [#allocation4], 0
    %s13 = scalar_lea.sflag [#allocation4], 1
    %14 = vsyncpa %s13, 0
    loop: start=0, step=1, limit=4
    $region2: #{tpu_custom_call.1} parent=1 // loop_pre_header
      _
    $region3: #{tpu_custom_call.1} parent=1 // loop_header
      %s16 = sphi 0, %s20
      %p17 = scmp.ge.s32.totalorder %s16, 4
      %s26 = sphi 0, %s28
      %s29 = sphi 0, %s26
      %s30 = sphi 0, %s29
      %s46 = sphi 0, %s30
      %s50 = sphi 0, %s50
      %s52 = sphi 0, %s50
      %s53 = sphi 0, %s52
      %s67 = sphi 0, %s53
      %s71 = sphi 0, %s71
      %s73 = sphi 0, %s71
      %s74 = sphi 0, %s73
      %s88 = sphi 0, %s74
      %s92 = sphi 0, %s92
      %s94 = sphi 0, %s92
      %s95 = sphi 0, %s94
      %s109 = sphi 0, %s95
      %s115 = sphi 0, %s117
      %s118 = sphi 0, %s115
      %s119 = sphi 0, %s118
      %s135 = sphi 0, %s119
    $region4: #{tpu_custom_call.1} parent=1 // loop_header_branch
      %19 = sbr.rel (%p17) target = $region8
    $region5: #{tpu_custom_call.1} parent=1 // loop_body
      %s21 = ssub.s32 %s16, 1
      %s22 = ssub.s32 %s16, 2
      %s23 = sadd.s32 %s16, 1
      %s24 = ssub.s32 %s16, %s23
      %p25 = scmp.eq.s32.totalorder %s24, 0
      %s27 = sadd.s32 %s26, 1
      %s28 = scalar_select %p25, %s26, %s27
      %p31 = pneg %p25
      %p32 = scmp.eq.s32.totalorder %s16, 1
      %p33 = por %p31, %p32
      %p34 = scmp.ne.s32.totalorder %s26, %s29
      %p35 = scmp.eq.s32.totalorder %s16, 0
      %p36 = por %p34, %p35
      %p37 = scmp.ne.s32.totalorder %s26, %s29
      %p38 = scmp.eq.s32.totalorder %s21, 1
      %p39 = por %p37, %p38
      %p40 = scmp.ne.s32.totalorder %s29, %s30
      %p41 = scmp.eq.s32.totalorder %s21, 0
      %p42 = por %p40, %p41
      %p43 = scmp.ne.s32.totalorder %s29, %s30
      %p44 = scmp.eq.s32.totalorder %s22, 1
      %p45 = por %p43, %p44
      %p47 = scmp.ne.s32.totalorder %s30, %s46
      %p48 = scmp.eq.s32.totalorder %s22, 0
      %p49 = por %p47, %p48
      %s51 = sadd.s32 %s50, 1
      %p54 = scmp.eq.s32.totalorder %s16, 1
      %p55 = scmp.ne.s32.totalorder %s50, %s52
      %p56 = scmp.eq.s32.totalorder %s16, 0
      %p57 = por %p55, %p56
      %p58 = scmp.ne.s32.totalorder %s50, %s52
      %p59 = scmp.eq.s32.totalorder %s21, 1
      %p60 = por %p58, %p59
      %p61 = scmp.ne.s32.totalorder %s52, %s53
      %p62 = scmp.eq.s32.totalorder %s21, 0
      %p63 = por %p61, %p62
      %p64 = scmp.ne.s32.totalorder %s52, %s53
      %p65 = scmp.eq.s32.totalorder %s22, 1
      %p66 = por %p64, %p65
      %p68 = scmp.ne.s32.totalorder %s53, %s67
      %p69 = scmp.eq.s32.totalorder %s22, 0
      %p70 = por %p68, %p69
      %s72 = sadd.s32 %s71, 1
      %p75 = scmp.eq.s32.totalorder %s16, 1
      %p76 = scmp.ne.s32.totalorder %s71, %s73
      %p77 = scmp.eq.s32.totalorder %s16, 0
      %p78 = por %p76, %p77
      %p79 = scmp.ne.s32.totalorder %s71, %s73
      %p80 = scmp.eq.s32.totalorder %s21, 1
      %p81 = por %p79, %p80
      %p82 = scmp.ne.s32.totalorder %s73, %s74
      %p83 = scmp.eq.s32.totalorder %s21, 0
      %p84 = por %p82, %p83
      %p85 = scmp.ne.s32.totalorder %s73, %s74
      %p86 = scmp.eq.s32.totalorder %s22, 1
      %p87 = por %p85, %p86
      %p89 = scmp.ne.s32.totalorder %s74, %s88
      %p90 = scmp.eq.s32.totalorder %s22, 0
      %p91 = por %p89, %p90
      %s93 = sadd.s32 %s92, 1
      %p96 = scmp.eq.s32.totalorder %s16, 1
      %p97 = scmp.ne.s32.totalorder %s92, %s94
      %p98 = scmp.eq.s32.totalorder %s16, 0
      %p99 = por %p97, %p98
      %p100 = scmp.ne.s32.totalorder %s92, %s94
      %p101 = scmp.eq.s32.totalorder %s21, 1
      %p102 = por %p100, %p101
      %p103 = scmp.ne.s32.totalorder %s94, %s95
      %p104 = scmp.eq.s32.totalorder %s21, 0
      %p105 = por %p103, %p104
      %p106 = scmp.ne.s32.totalorder %s94, %s95
      %p107 = scmp.eq.s32.totalorder %s22, 1
      %p108 = por %p106, %p107
      %p110 = scmp.ne.s32.totalorder %s95, %s109
      %p111 = scmp.eq.s32.totalorder %s22, 0
      %p112 = por %p110, %p111
      %s113 = ssub.s32 %s16, %s23
      %p114 = scmp.eq.s32.totalorder %s113, 0
      %s116 = sadd.s32 %s115, 1
      %s117 = scalar_select %p114, %s115, %s116
      %p120 = pneg %p114
      %p121 = scmp.eq.s32.totalorder %s16, 1
      %p122 = por %p120, %p121
      %p123 = scmp.ne.s32.totalorder %s115, %s118
      %p124 = scmp.eq.s32.totalorder %s16, 0
      %p125 = por %p123, %p124
      %p126 = scmp.ne.s32.totalorder %s115, %s118
      %p127 = scmp.eq.s32.totalorder %s21, 1
      %p128 = por %p126, %p127
      %p129 = scmp.ne.s32.totalorder %s118, %s119
      %p130 = scmp.eq.s32.totalorder %s21, 0
      %p131 = por %p129, %p130
      %p132 = scmp.ne.s32.totalorder %s118, %s119
      %p133 = scmp.eq.s32.totalorder %s22, 1
      %p134 = por %p132, %p133
      %p136 = scmp.ne.s32.totalorder %s119, %s135
      %p137 = scmp.eq.s32.totalorder %s22, 0
      %p138 = por %p136, %p137
      %p139 = scmp.le.s32.totalorder 1, %s16
      %p140 = scmp.lt.s32.totalorder %s16, 3
      %p141 = pnand %p139, %p140
      %p142 = pneg %p141
      // Predicated region
      $region9: #{tpu_custom_call.1} parent=5 // pred_check
        _
      $region10: #{tpu_custom_call.1} parent=5 // pred_check_branch
        %144 = sbr.rel (%p141) target = $region12
      $region11: #{tpu_custom_call.1} parent=5 // pred_region
        %s145 = ssub.s32 %s16, 1
        // Predicated region
        $region13: #{tpu_custom_call.1} parent=11 // pred_check
          %p146 = pneg %p63
        $region14: #{tpu_custom_call.1} parent=11 // pred_check_branch
          %148 = sbr.rel (%p146) target = $region16
        $region15: #{tpu_custom_call.1} parent=11 // pred_region
          _
        $region16: #{tpu_custom_call.1} parent=11 // pred_fallthru
          _
        // Predicated region
        $region17: #{tpu_custom_call.1} parent=11 // pred_check
          %p149 = pneg %p84
        $region18: #{tpu_custom_call.1} parent=11 // pred_check_branch
          %151 = sbr.rel (%p149) target = $region20
        $region19: #{tpu_custom_call.1} parent=11 // pred_region
          _
        $region20: #{tpu_custom_call.1} parent=11 // pred_fallthru
          _
        // Predicated region
        $region21: #{tpu_custom_call.1} parent=11 // pred_check
          %p152 = pneg %p105
        $region22: #{tpu_custom_call.1} parent=11 // pred_check_branch
          %154 = sbr.rel (%p152) target = $region24
        $region23: #{tpu_custom_call.1} parent=11 // pred_region
          _
        $region24: #{tpu_custom_call.1} parent=11 // pred_fallthru
          _
      $region12: #{tpu_custom_call.1} parent=5 // pred_fallthru
        _
      %p155 = scmp.lt.s32.totalorder %s16, 2
      // Predicated region
      $region25: #{tpu_custom_call.1} parent=5 // pred_check
        %p156 = pneg %p155
      $region26: #{tpu_custom_call.1} parent=5 // pred_check_branch
        %158 = sbr.rel (%p156) target = $region28
      $region27: #{tpu_custom_call.1} parent=5 // pred_region
        // Predicated region
        $region29: #{tpu_custom_call.1} parent=27 // pred_check
          %p159 = pneg %p36
        $region30: #{tpu_custom_call.1} parent=27 // pred_check_branch
          %161 = sbr.rel (%p159) target = $region32
        $region31: #{tpu_custom_call.1} parent=27 // pred_region
          %s162 = sand.u32 %s26, 1
          %s163 = scalar_lea.sflag [#allocation3], %s162
          %s164 = sand.u32 %s26, 1
          %s165 = smul.addr %s164, 12
          %s166 = scalar_lea.vmem [#allocation2], %s165
          %s168 = ssub.s32 192, 192
          %169 = vsyncadd %s163, %s168
          %s170 = smul.addr %s16, 3
          %s171 = smul.addr %s170, 64
          %s172 = scalar_lea.hbm %s0, %s171
          %s174 = sshll.u32 %s166, 4
          %s175 = int_to_ptr.vmem [resolvable:$true] %s174
          %177 = dma.hbm_to_vmem [thread:$0]  %s172, 192, %s175, %s163
        $region32: #{tpu_custom_call.1} parent=27 // pred_fallthru
          _
      $region28: #{tpu_custom_call.1} parent=5 // pred_fallthru
        _
      %p178 = scmp.le.s32.totalorder 1, %s16
      %p179 = scmp.lt.s32.totalorder %s16, 3
      %p180 = pnand %p178, %p179
      %p181 = pneg %p180
      // Predicated region
      $region33: #{tpu_custom_call.1} parent=5 // pred_check
        _
      $region34: #{tpu_custom_call.1} parent=5 // pred_check_branch
        %183 = sbr.rel (%p180) target = $region36
      $region35: #{tpu_custom_call.1} parent=5 // pred_region
        %s184 = ssub.s32 %s16, 1
        %s185 = sand.u32 %s29, 1
        %s186 = scalar_lea.sflag [#allocation3], %s185
        %s187 = sand.u32 %s29, 1
        %s188 = smul.addr %s187, 12
        %s189 = scalar_lea.vmem [#allocation2], %s188
        // Predicated region
        $region37: #{tpu_custom_call.1} parent=35 // pred_check
          %p190 = pneg %p42
        $region38: #{tpu_custom_call.1} parent=35 // pred_check_branch
          %192 = sbr.rel (%p190) target = $region40
        $region39: #{tpu_custom_call.1} parent=35 // pred_region
          %193 = dma.done %s186, 192
        $region40: #{tpu_custom_call.1} parent=35 // pred_fallthru
          _
        %s194 = sand.u32 %s29, 1
        %s195 = scalar_lea.sflag [#allocation3], %s194
        %s196 = sand.u32 %s29, 1
        %s197 = smul.addr %s196, 12
        %s198 = scalar_lea.vmem [#allocation2], %s197
        %p199 = pneg %p42
        %p200 = pneg %p39
        %p201 = pneg %p63
        %p202 = pneg %p60
        %p203 = pneg %p84
        %p204 = pneg %p81
        %p205 = pneg %p105
        %p206 = pneg %p102
        %p207 = pneg %p131
        %p208 = pneg %p128
        %s209 = sand.u32 %s118, 1
        %s210 = scalar_lea.sflag [#allocation4], %s209
        %s211 = sand.u32 %s118, 1
        %s212 = smul.addr %s211, 24
        %s213 = scalar_lea.vmem [#allocation5], %s212
        %v214 = vld [vmem:[%s189] sm:$0xff]
        %v215 = vld [vmem:[%s189 + $0x8] sm:$0xf]
        %v216 = vld [vmem:[%s1] sm:$0xf]
        %v217 = vld [vmem:[%s2] sm:$0xff]
        %v218 = vld [vmem:[%s3] sm:$0xff]
        %220 = vset.pattern.permute.xlu0 0
        %221 = vperm.xlu0 %220, %v216
        %v222 = vpop.permute.xlu0 %221
        %v224 = vunpack.c.l.s4 839922192
        %v225 = vunpack.c.0.s8 %v224
        %v226 = vlaneseq
        %v227 = vshrl.u32 %v226, 7
        %v228 = vsub.s32 %v225, %v227
        %v229 = vrot.slane %v222, %v228
        %v231 = vmul.f32 %v214, %v229
        %v232 = vmul.f32 %v215, %v229
        %v233 = vadd.f32 %v231, 0.0
        %v234 = vadd.f32 %v232, 0.0
        %235 = vset.pattern.permute.xlu0 1
        %236 = vperm.xlu0 %235, %v216
        %v237 = vpop.permute.xlu0 %236
        %v239 = vunpack.c.l.s4 839922192
        %v240 = vunpack.c.0.s8 %v239
        %v241 = vlaneseq
        %v242 = vshrl.u32 %v241, 7
        %v243 = vsub.s32 %v240, %v242
        %v244 = vrot.slane %v237, %v243
        %v246 = vmul.f32 %v214, %v244
        %v247 = vmul.f32 %v215, %v244
        %250 = vrot.lane.b32.xlu0 %v246, 127
        %v251 = vpop.permute.xlu0 %250
        %252 = vrot.lane.b32.xlu0 %v247, 127
        %v253 = vpop.permute.xlu0 %252
        %v254 = vrot.slane %v251, 4
        %v255 = vrot.slane %v253, 4
        %vm256 = vcmask 1043456
        %v257 = vsel %vm256, %v254, %v255
        %vm258 = vcmask 1039360
        %v259 = vsel %vm258, %v251, %v257
        %v262 = vadd.f32 %v233, %v259
        %v263 = vadd.f32 %v234, %v253
        %264 = vset.pattern.permute.xlu0 2
        %265 = vperm.xlu0 %264, %v216
        %v266 = vpop.permute.xlu0 %265
        %v268 = vunpack.c.l.s4 839922192
        %v269 = vunpack.c.0.s8 %v268
        %v270 = vlaneseq
        %v271 = vshrl.u32 %v270, 7
        %v272 = vsub.s32 %v269, %v271
        %v273 = vrot.slane %v266, %v272
        %v275 = vmul.f32 %v214, %v273
        %v276 = vmul.f32 %v215, %v273
        %279 = vrot.lane.b32.xlu0 %v275, 126
        %v280 = vpop.permute.xlu0 %279
        %281 = vrot.lane.b32.xlu0 %v276, 126
        %v282 = vpop.permute.xlu0 %281
        %v283 = vrot.slane %v280, 4
        %v284 = vrot.slane %v282, 4
        %v285 = vsel %vm256, %v283, %v284
        %vm286 = vcmask 1031168
        %v287 = vsel %vm286, %v280, %v285
        %v290 = vadd.f32 %v262, %v287
        %v291 = vadd.f32 %v263, %v282
        %292 = vset.pattern.permute.xlu0 3
        %293 = vperm.xlu0 %292, %v216
        %v294 = vpop.permute.xlu0 %293
        %v296 = vunpack.c.l.s4 839922192
        %v297 = vunpack.c.0.s8 %v296
        %v298 = vlaneseq
        %v299 = vshrl.u32 %v298, 7
        %v300 = vsub.s32 %v297, %v299
        %v301 = vrot.slane %v294, %v300
        %v303 = vmul.f32 %v214, %v301
        %v304 = vmul.f32 %v215, %v301
        %307 = vrot.lane.b32.xlu0 %v303, 110
        %v308 = vpop.permute.xlu0 %307
        %309 = vrot.lane.b32.xlu0 %v304, 110
        %v310 = vpop.permute.xlu0 %309
        %v311 = vrot.slane %v308, 4
        %v312 = vrot.slane %v310, 4
        %v313 = vsel %vm256, %v311, %v312
        %vm314 = vcmask 900096
        %v315 = vsel %vm314, %v308, %v313
        %v318 = vadd.f32 %v290, %v315
        %v319 = vadd.f32 %v291, %v310
        %320 = vset.pattern.permute.xlu0 4
        %321 = vperm.xlu0 %320, %v216
        %v322 = vpop.permute.xlu0 %321
        %v324 = vunpack.c.l.s4 839922192
        %v325 = vunpack.c.0.s8 %v324
        %v326 = vlaneseq
        %v327 = vshrl.u32 %v326, 7
        %v328 = vsub.s32 %v325, %v327
        %v329 = vrot.slane %v322, %v328
        %v331 = vmul.f32 %v214, %v329
        %v332 = vmul.f32 %v215, %v329
        %335 = vrot.lane.b32.xlu0 %v331, 109
        %v336 = vpop.permute.xlu0 %335
        %337 = vrot.lane.b32.xlu0 %v332, 109
        %v338 = vpop.permute.xlu0 %337
        %v339 = vrot.slane %v336, 4
        %v340 = vrot.slane %v338, 4
        %v341 = vsel %vm256, %v339, %v340
        %vm342 = vcmask 891904
        %v343 = vsel %vm342, %v336, %v341
        %v346 = vadd.f32 %v318, %v343
        %v347 = vadd.f32 %v319, %v338
        %348 = vset.pattern.permute.xlu0 5
        %349 = vperm.xlu0 %348, %v216
        %v350 = vpop.permute.xlu0 %349
        %v352 = vunpack.c.l.s4 839922192
        %v353 = vunpack.c.0.s8 %v352
        %v354 = vlaneseq
        %v355 = vshrl.u32 %v354, 7
        %v356 = vsub.s32 %v353, %v355
        %v357 = vrot.slane %v350, %v356
        %v359 = vmul.f32 %v214, %v357
        %v360 = vmul.f32 %v215, %v357
        %363 = vrot.lane.b32.xlu0 %v359, 108
        %v364 = vpop.permute.xlu0 %363
        %365 = vrot.lane.b32.xlu0 %v360, 108
        %v366 = vpop.permute.xlu0 %365
        %v367 = vrot.slane %v364, 4
        %v368 = vrot.slane %v366, 4
        %v369 = vsel %vm256, %v367, %v368
        %vm370 = vcmask 883712
        %v371 = vsel %vm370, %v364, %v369
        %v374 = vadd.f32 %v346, %v371
        %v375 = vadd.f32 %v347, %v366
        %376 = vset.pattern.permute.xlu0 6
        %377 = vperm.xlu0 %376, %v216
        %v378 = vpop.permute.xlu0 %377
        %v380 = vunpack.c.l.s4 839922192
        %v381 = vunpack.c.0.s8 %v380
        %v382 = vlaneseq
        %v383 = vshrl.u32 %v382, 7
        %v384 = vsub.s32 %v381, %v383
        %v385 = vrot.slane %v378, %v384
        %v387 = vmul.f32 %v214, %v385
        %v388 = vmul.f32 %v215, %v385
        %391 = vrot.lane.b32.xlu0 %v387, 92
        %v392 = vpop.permute.xlu0 %391
        %393 = vrot.lane.b32.xlu0 %v388, 92
        %v394 = vpop.permute.xlu0 %393
        %v395 = vrot.slane %v392, 4
        %v396 = vrot.slane %v394, 4
        %v397 = vsel %vm256, %v395, %v396
        %vm398 = vcmask 752640
        %v399 = vsel %vm398, %v392, %v397
        %v402 = vadd.f32 %v374, %v399
        %v403 = vadd.f32 %v375, %v394
        %404 = vset.pattern.permute.xlu0 7
        %405 = vperm.xlu0 %404, %v216
        %v406 = vpop.permute.xlu0 %405
        %v408 = vunpack.c.l.s4 839922192
        %v409 = vunpack.c.0.s8 %v408
        %v410 = vlaneseq
        %v411 = vshrl.u32 %v410, 7
        %v412 = vsub.s32 %v409, %v411
        %v413 = vrot.slane %v406, %v412
        %v415 = vmul.f32 %v214, %v413
        %v416 = vmul.f32 %v215, %v413
        %419 = vrot.lane.b32.xlu0 %v415, 91
        %v420 = vpop.permute.xlu0 %419
        %421 = vrot.lane.b32.xlu0 %v416, 91
        %v422 = vpop.permute.xlu0 %421
        %v423 = vrot.slane %v420, 4
        %v424 = vrot.slane %v422, 4
        %v425 = vsel %vm256, %v423, %v424
        %vm426 = vcmask 744448
        %v427 = vsel %vm426, %v420, %v425
        %v430 = vadd.f32 %v402, %v427
        %v431 = vadd.f32 %v403, %v422
        %432 = vset.pattern.permute.xlu0 8
        %433 = vperm.xlu0 %432, %v216
        %v434 = vpop.permute.xlu0 %433
        %v436 = vunpack.c.l.s4 839922192
        %v437 = vunpack.c.0.s8 %v436
        %v438 = vlaneseq
        %v439 = vshrl.u32 %v438, 7
        %v440 = vsub.s32 %v437, %v439
        %v441 = vrot.slane %v434, %v440
        %v443 = vmul.f32 %v214, %v441
        %v444 = vmul.f32 %v215, %v441
        %447 = vrot.lane.b32.xlu0 %v443, 90
        %v448 = vpop.permute.xlu0 %447
        %449 = vrot.lane.b32.xlu0 %v444, 90
        %v450 = vpop.permute.xlu0 %449
        %v451 = vrot.slane %v448, 4
        %v452 = vrot.slane %v450, 4
        %v453 = vsel %vm256, %v451, %v452
        %vm454 = vcmask 736256
        %v455 = vsel %vm454, %v448, %v453
        %v458 = vadd.f32 %v430, %v455
        %v459 = vadd.f32 %v431, %v450
        %461 = vset.pattern.permute.xlu0 0
        %462 = vperm.xlu0 %461, %v218
        %v463 = vpop.permute.xlu0 %462
        %466 = vset.pattern.permute.xlu0 0
        %467 = vperm.xlu0 %466, %v217
        %v468 = vpop.permute.xlu0 %467
        %v472 = vlaneseq
        %v473 = vshrl.u32 %v472, 7
        %v474 = vsub.s32 0, %v473
        %v475 = vrot.slane %v458, %v474
        %v476 = vlaneseq
        %v477 = vshrl.u32 %v476, 7
        %v478 = vsub.s32 4, %v477
        %v479 = vrot.slane %v458, %v478
        %v480 = vlaneseq
        %v481 = vshrl.u32 %v480, 7
        %v482 = vsub.s32 0, %v481
        %v483 = vrot.slane %v459, %v482
        %v487 = vlaneseq
        %v488 = vshrl.u32 %v487, 7
        %v489 = vsub.s32 0, %v488
        %v490 = vrot.slane %v475, %v489
        %v491 = vlaneseq
        %v492 = vshrl.u32 %v491, 7
        %v493 = vsub.s32 0, %v492
        %v494 = vrot.slane %v479, %v493
        %v495 = vlaneseq
        %v496 = vshrl.u32 %v495, 7
        %v497 = vsub.s32 0, %v496
        %v498 = vrot.slane %v483, %v497
        %v499 = vmul.f32 %v468, %v490
        %v500 = vmul.f32 %v468, %v494
        %v501 = vmul.f32 %v468, %v498
        %v502 = vadd.f32 %v463, %v499
        %v503 = vadd.f32 %v463, %v500
        %v504 = vadd.f32 %v463, %v501
        %505 = vset.pattern.permute.xlu0 1
        %506 = vperm.xlu0 %505, %v217
        %v507 = vpop.permute.xlu0 %506
        %v509 = vlaneseq
        %v510 = vshrl.u32 %v509, 7
        %v511 = vsub.s32 1, %v510
        %v512 = vrot.slane %v458, %v511
        %v513 = vlaneseq
        %v514 = vshrl.u32 %v513, 7
        %v515 = vsub.s32 5, %v514
        %v516 = vrot.slane %v458, %v515
        %v517 = vlaneseq
        %v518 = vshrl.u32 %v517, 7
        %v519 = vsub.s32 1, %v518
        %v520 = vrot.slane %v459, %v519
        %v524 = vlaneseq
        %v525 = vshrl.u32 %v524, 7
        %v526 = vsub.s32 1, %v525
        %v527 = vrot.slane %v512, %v526
        %v528 = vlaneseq
        %v529 = vshrl.u32 %v528, 7
        %v530 = vsub.s32 1, %v529
        %v531 = vrot.slane %v516, %v530
        %v532 = vlaneseq
        %v533 = vshrl.u32 %v532, 7
        %v534 = vsub.s32 1, %v533
        %v535 = vrot.slane %v520, %v534
        %v536 = vmul.f32 %v507, %v527
        %v537 = vmul.f32 %v507, %v531
        %v538 = vmul.f32 %v507, %v535
        %v539 = vadd.f32 %v502, %v536
        %v540 = vadd.f32 %v503, %v537
        %v541 = vadd.f32 %v504, %v538
        %542 = vset.pattern.permute.xlu0 2
        %543 = vperm.xlu0 %542, %v217
        %v544 = vpop.permute.xlu0 %543
        %v546 = vlaneseq
        %v547 = vshrl.u32 %v546, 7
        %v548 = vsub.s32 2, %v547
        %v549 = vrot.slane %v458, %v548
        %v550 = vlaneseq
        %v551 = vshrl.u32 %v550, 7
        %v552 = vsub.s32 6, %v551
        %v553 = vrot.slane %v458, %v552
        %v554 = vlaneseq
        %v555 = vshrl.u32 %v554, 7
        %v556 = vsub.s32 2, %v555
        %v557 = vrot.slane %v459, %v556
        %v561 = vlaneseq
        %v562 = vshrl.u32 %v561, 7
        %v563 = vsub.s32 2, %v562
        %v564 = vrot.slane %v549, %v563
        %v565 = vlaneseq
        %v566 = vshrl.u32 %v565, 7
        %v567 = vsub.s32 2, %v566
        %v568 = vrot.slane %v553, %v567
        %v569 = vlaneseq
        %v570 = vshrl.u32 %v569, 7
        %v571 = vsub.s32 2, %v570
        %v572 = vrot.slane %v557, %v571
        %v573 = vmul.f32 %v544, %v564
        %v574 = vmul.f32 %v544, %v568
        %v575 = vmul.f32 %v544, %v572
        %v576 = vadd.f32 %v539, %v573
        %v577 = vadd.f32 %v540, %v574
        %v578 = vadd.f32 %v541, %v575
        %579 = vset.pattern.permute.xlu0 3
        %580 = vperm.xlu0 %579, %v217
        %v581 = vpop.permute.xlu0 %580
        %v583 = vlaneseq
        %v584 = vshrl.u32 %v583, 7
        %v585 = vsub.s32 3, %v584
        %v586 = vrot.slane %v458, %v585
        %v587 = vlaneseq
        %v588 = vshrl.u32 %v587, 7
        %v589 = vsub.s32 7, %v588
        %v590 = vrot.slane %v458, %v589
        %v591 = vlaneseq
        %v592 = vshrl.u32 %v591, 7
        %v593 = vsub.s32 3, %v592
        %v594 = vrot.slane %v459, %v593
        %v598 = vlaneseq
        %v599 = vshrl.u32 %v598, 7
        %v600 = vsub.s32 3, %v599
        %v601 = vrot.slane %v586, %v600
        %v602 = vlaneseq
        %v603 = vshrl.u32 %v602, 7
        %v604 = vsub.s32 3, %v603
        %v605 = vrot.slane %v590, %v604
        %v606 = vlaneseq
        %v607 = vshrl.u32 %v606, 7
        %v608 = vsub.s32 3, %v607
        %v609 = vrot.slane %v594, %v608
        %v610 = vmul.f32 %v581, %v601
        %v611 = vmul.f32 %v581, %v605
        %v612 = vmul.f32 %v581, %v609
        %v613 = vadd.f32 %v576, %v610
        %v614 = vadd.f32 %v577, %v611
        %v615 = vadd.f32 %v578, %v612
        %616 = vst [vmem:[%s213] sm:$0xff] %v613
        %617 = vst [vmem:[%s213 + $0x8] sm:$0xff] %v614
        %vm618 = vcmask 261120
        %619 = vst.msk [vmem:[%s213 + $0x10] sm:$0xff] %vm618, %v615
        %s620 = sand.u32 %s118, 1
        %s621 = scalar_lea.sflag [#allocation4], %s620
        %s622 = sand.u32 %s118, 1
        %s623 = smul.addr %s622, 24
        %s624 = scalar_lea.vmem [#allocation5], %s623
        // Predicated region
        $region41: #{tpu_custom_call.1} parent=35 // pred_check
          %p625 = pneg %p128
        $region42: #{tpu_custom_call.1} parent=35 // pred_check_branch
          %627 = sbr.rel (%p625) target = $region44
        $region43: #{tpu_custom_call.1} parent=35 // pred_region
          %s629 = ssub.s32 384, 384
          %630 = vsyncadd %s621, %s629
          %s631 = smul.addr %s21, 3
          %s632 = smul.addr %s631, 128
          %s633 = scalar_lea.hbm %s4, %s632
          %s635 = sshll.u32 %s624, 4
          %s636 = int_to_ptr.vmem [resolvable:$true] %s635
          %638 = dma.vmem_to_hbm [thread:$0]  %s636, 384, %s633, %s621
        $region44: #{tpu_custom_call.1} parent=35 // pred_fallthru
          _
      $region36: #{tpu_custom_call.1} parent=5 // pred_fallthru
        _
      %p639 = scmp.le.s32.totalorder 2, %s16
      // Predicated region
      $region45: #{tpu_custom_call.1} parent=5 // pred_check
        %p640 = pneg %p639
      $region46: #{tpu_custom_call.1} parent=5 // pred_check_branch
        %642 = sbr.rel (%p640) target = $region48
      $region47: #{tpu_custom_call.1} parent=5 // pred_region
        %s643 = ssub.s32 %s16, 2
        // Predicated region
        $region49: #{tpu_custom_call.1} parent=47 // pred_check
          %p644 = pneg %p134
        $region50: #{tpu_custom_call.1} parent=47 // pred_check_branch
          %646 = sbr.rel (%p644) target = $region52
        $region51: #{tpu_custom_call.1} parent=47 // pred_region
          %s647 = sand.u32 %s119, 1
          %s648 = scalar_lea.sflag [#allocation4], %s647
          %s649 = sand.u32 %s119, 1
          %s650 = smul.addr %s649, 24
          %s651 = scalar_lea.vmem [#allocation5], %s650
          %652 = dma.done %s648, 384
        $region52: #{tpu_custom_call.1} parent=47 // pred_fallthru
          _
      $region48: #{tpu_custom_call.1} parent=5 // pred_fallthru
        _
    $region6: #{tpu_custom_call.1} parent=1 // loop_footer
      %s20 = sadd.s32 1, %s16
    $region7: #{tpu_custom_call.1} parent=1 // loop_footer_branch
      %15 = sbr.rel target = $region3
    $region8: #{tpu_custom_call.1} parent=1 // loop_exit
      _
    %653 = vsyncpa [#allocation3], 1
    %s654 = scalar_lea.sflag [#allocation3], 1
    %655 = vsyncpa %s654, 1
    %656 = vsyncpa [#allocation4], 1
    %s657 = scalar_lea.sflag [#allocation4], 1
    %658 = vsyncpa %s657, 1

</llo_original>
